<compile_context>
chip_gen: v5e
topology: v5e:2x2
jax: 0.10.0
libtpu: 0.0.40
codegen_flags: <defaults>
</compile_context>

<pallas_src>
import jax
import jax.numpy as jnp
from jax.experimental import pallas as pl
from jax.experimental.pallas import tpu as pltpu

EPS = 1e-5


def _round_up(x, m):
    return ((x + m - 1) // m) * m


def _sublane_granule(dtype):
    # Rows per packed vreg sublane group: 8 for f32, 16 for bf16, 32 for int8/fp8.
    return max(8, 32 // jnp.dtype(dtype).itemsize)


def prenorm_linear_kernel(x_ref, gamma_ref, beta_ref, w_ref, b_ref, o_ref):
    # x_ref:     (TILE_R, D)      token rows for this grid step
    # gamma_ref: (1, D)  f32      LayerNorm scale   (resident, single-buffered)
    # beta_ref:  (1, D)  f32      LayerNorm shift   (resident, single-buffered)
    # w_ref:     (D, D)  bf16     Linear weight, (in, out) layout (resident)
    # b_ref:     (1, D)  f32      Linear bias       (resident, single-buffered)
    xf = x_ref[...].astype(jnp.float32)

    # LayerNorm over the last dim, statistics in f32 (matches torch.nn.LayerNorm:
    # population variance, eps inside the sqrt).
    mean = jnp.mean(xf, axis=-1, keepdims=True)
    xc = xf - mean
    var = jnp.mean(xc * xc, axis=-1, keepdims=True)
    xn = xc * jax.lax.rsqrt(var + EPS)
    xn = xn * gamma_ref[...] + beta_ref[...]

    # fn: Linear(D, D) on the MXU. bf16 feeds (MXU-native on v5e/v6e/v7x),
    # float32 accumulator.
    y = jnp.dot(xn.astype(w_ref.dtype), w_ref[...],
                preferred_element_type=jnp.float32)
    y = y + b_ref[...]
    o_ref[...] = y.astype(o_ref.dtype)


def prenorm_linear(x, gamma, beta, w, b, *, tile_r=1024):
    """x: (B, N, D); returns fn(LayerNorm(x)) with fn = Linear(D, D).

    w is (D_in, D_out), so the kernel computes x @ w + b
    (equivalent to torch's x @ weight.T + b with weight = w.T).
    """
    B, N, D = x.shape
    R = B * N
    x2 = x.reshape(R, D)
    gamma2 = gamma.reshape(1, D).astype(jnp.float32)
    beta2 = beta.reshape(1, D).astype(jnp.float32)
    b2 = b.reshape(1, D).astype(jnp.float32)
    # MXU is bf16-native on v5e/v6e/v7x: keep the weight in bf16 (f32 accumulate
    # in the kernel). Halves resident VMEM and HBM weight traffic vs. f32.
    w_mxu = w.astype(jnp.bfloat16)

    # ---- Row-tile selection -------------------------------------------------
    granule = _sublane_granule(x.dtype)           # dtype-aware sublane packing
    r_g = _round_up(R, granule)
    tr = min(_round_up(max(int(tile_r), granule), granule), r_g)
    # Keep >= MIN_TILES grid steps when R allows it: preserves DMA/compute
    # overlap and gives each TensorCore several steps under megacore sharding.
    MIN_TILES = 8
    cap = (r_g // MIN_TILES) // granule * granule
    if cap >= granule:
        tr = min(tr, cap)
    # MXU-friendly M alignment for large tiles (v6e/v7x: 256x256 MXU tiles).
    if tr >= 256:
        tr = (tr // 256) * 256

    R_pad = _round_up(R, tr)
    if R_pad != R:
        # Zero-padded rows are harmless through LN (var=0 -> finite rsqrt(eps))
        # and are sliced off after the call.
        x2 = jnp.pad(x2, ((0, R_pad - R), (0, 0)))
    num_tiles = R_pad // tr

    # ---- VMEM budget (per-generation cap) -----------------------------------
    try:
        vmem_cap = int(pltpu.get_tpu_info().vmem_capacity_bytes)
    except Exception:
        vmem_cap = 64 * 1024 * 1024               # conservative: v7x per-core
    itemsize = jnp.dtype(x.dtype).itemsize
    est = (2 * tr * D * itemsize                  # x tiles (double-buffered)
           + 2 * tr * D * itemsize                # out tiles (double-buffered)
           + 2 * D * D * 2                        # bf16 weight (2x covers fallback)
           + 16 * D * 4)                          # gamma/beta/bias + slack
    vmem_limit = int(min(max(2 * est, 8 * 1024 * 1024), int(0.75 * vmem_cap)))

    # TODO(synk): for large D (>= ~1024 on v7x, ~2048 on v5e/v6e) additionally
    # tile the K/N dims of the Linear (extra "arbitrary" grid axis + f32 VMEM
    # accumulator scratch); resident un-tiled weight is fine at these shapes.

    def make_call(resident_mode):
        def resident(shape):
            if resident_mode is None:
                return pl.BlockSpec(shape, lambda i: (0, 0))
            return pl.BlockSpec(shape, lambda i: (0, 0), pipeline_mode=resident_mode)

        return pl.pallas_call(
            prenorm_linear_kernel,
            out_shape=jax.ShapeDtypeStruct((R_pad, D), x.dtype),
            grid_spec=pltpu.PrefetchScalarGridSpec(
                num_scalar_prefetch=0,
                grid=(num_tiles,),
                in_specs=[
                    pl.BlockSpec((tr, D), lambda i: (i, 0)),   # x (row-tiled)
                    resident((1, D)),                          # gamma (resident)
                    resident((1, D)),                          # beta  (resident)
                    resident((D, D)),                          # W     (resident)
                    resident((1, D)),                          # bias  (resident)
                ],
                out_specs=pl.BlockSpec((tr, D), lambda i: (i, 0)),
            ),
            compiler_params=pltpu.CompilerParams(
                # Row tiles are independent -> shard across both TCs on v7x;
                # neutral on single-TC v5e/v6e.
                dimension_semantics=("parallel",),
                vmem_limit_bytes=vmem_limit,
            ),
        )

    try:
        # Constant-index operands are never re-fetched; a single buffer halves
        # their resident VMEM (decisive for W at large D on v7x's 64 MiB).
        out = make_call(pl.Buffered(1))(x2, gamma2, beta2, w_mxu, b2)
    except Exception:
        # Fallback for JAX versions that reject single-buffered pipeline_mode.
        out = make_call(None)(x2, gamma2, beta2, w_mxu, b2)

    if R_pad != R:
        out = out[:R]
    return out.reshape(B, N, D)


if __name__ == "__main__":
    key = jax.random.PRNGKey(0)
    # D multiple of 128 keeps the output lane-dense / MXU-friendly; R = 400
    # exercises row tiling, the >=8-grid-steps cap and the padded final tile.
    B, N, D = 2, 200, 128

    kx, kw, kb, kg, kbt = jax.random.split(key, 5)
    x = jax.random.normal(kx, (B, N, D), dtype=jnp.float32)

    # LayerNorm params (non-trivial values to exercise the affine path).
    gamma = 1.0 + 0.1 * jax.random.normal(kg, (D,), dtype=jnp.float32)
    beta = 0.1 * jax.random.normal(kbt, (D,), dtype=jnp.float32)

    # fn = Linear(D, D), stored as (in, out).
    w = jax.random.normal(kw, (D, D), dtype=jnp.float32) * (1.0 / jnp.sqrt(D))
    b = jax.random.normal(kb, (D,), dtype=jnp.float32) * 0.01

    out = prenorm_linear(x, gamma, beta, w, b)
    out = jax.block_until_ready(out)

    # Plain-JAX references.
    mean = jnp.mean(x, axis=-1, keepdims=True)
    var = jnp.mean((x - mean) ** 2, axis=-1, keepdims=True)
    xn = (x - mean) * jax.lax.rsqrt(var + EPS) * gamma + beta
    # (a) numerics-matched reference: bf16 MXU feeds, f32 accumulation.
    ref_bf16 = jnp.dot(xn.astype(jnp.bfloat16).astype(jnp.float32),
                       w.astype(jnp.bfloat16).astype(jnp.float32),
                       precision=jax.lax.Precision.HIGHEST) + b
    # (b) exact f32 module reference (looser tolerance: bf16 MXU feeds).
    ref_f32 = jnp.dot(xn, w, precision=jax.lax.Precision.HIGHEST) + b

    assert out.shape == ref_f32.shape
    assert jnp.allclose(out, ref_bf16, atol=5e-3, rtol=5e-3), \
        "mismatch vs bf16-feed reference"
    assert jnp.allclose(out, ref_f32, atol=3e-2, rtol=3e-2), \
        "mismatch vs f32 module reference"

    print("KERNEL_OK")
</pallas_src>

<mosaic_0001>
module attributes {stable_mosaic.version = 11 : i64} {
  func.func @prenorm_linear_kernel(%arg0: i32, %arg1: memref<48x128xf32, #tpu.memory_space<vmem>>, %arg2: memref<1x128xf32, #tpu.memory_space<vmem>>, %arg3: memref<1x128xf32, #tpu.memory_space<vmem>>, %arg4: memref<128x128xbf16, #tpu.memory_space<vmem>>, %arg5: memref<1x128xf32, #tpu.memory_space<vmem>>, %arg6: memref<48x128xf32, #tpu.memory_space<vmem>>) attributes {dimension_semantics = [#tpu.dimension_semantics<parallel>], iteration_bounds = array<i64: 9>, scalar_prefetch = 0 : i64, scratch_operands = 0 : i64, tpu.core_type = #tpu.core_type<tc>, window_params = [{transform_indices = @transform_0, window_bounds = array<i64: 48, 128>}, {pipeline_mode = #tpu.pipeline_mode<synchronous>, transform_indices = @transform_1, window_bounds = array<i64: 1, 128>}, {pipeline_mode = #tpu.pipeline_mode<synchronous>, transform_indices = @transform_2, window_bounds = array<i64: 1, 128>}, {pipeline_mode = #tpu.pipeline_mode<synchronous>, transform_indices = @transform_3, window_bounds = array<i64: 128, 128>}, {pipeline_mode = #tpu.pipeline_mode<synchronous>, transform_indices = @transform_4, window_bounds = array<i64: 1, 128>}, {transform_indices = @transform_5, window_bounds = array<i64: 48, 128>}]} {
    %c0 = arith.constant 0 : index
    %c0_0 = arith.constant 0 : index
    %0 = vector.load %arg1[%c0, %c0_0] : memref<48x128xf32, #tpu.memory_space<vmem>>, vector<48x128xf32>
    %cst = arith.constant dense<0.000000e+00> : vector<48xf32>
    %1 = vector.multi_reduction <add>, %0, %cst [1] : vector<48x128xf32> to vector<48xf32>
    %2 = vector.shape_cast %1 : vector<48xf32> to vector<48x1xf32>
    %cst_1 = arith.constant 1.280000e+02 : f32
    %3 = vector.broadcast %cst_1 : f32 to vector<48x1xf32>
    %4 = arith.divf %2, %3 : vector<48x1xf32>
    %5 = vector.broadcast %4 : vector<48x1xf32> to vector<48x128xf32>
    %6 = arith.subf %0, %5 : vector<48x128xf32>
    %7 = arith.mulf %6, %6 : vector<48x128xf32>
    %cst_2 = arith.constant dense<0.000000e+00> : vector<48xf32>
    %8 = vector.multi_reduction <add>, %7, %cst_2 [1] : vector<48x128xf32> to vector<48xf32>
    %9 = vector.shape_cast %8 : vector<48xf32> to vector<48x1xf32>
    %cst_3 = arith.constant 1.280000e+02 : f32
    %10 = vector.broadcast %cst_3 : f32 to vector<48x1xf32>
    %11 = arith.divf %9, %10 : vector<48x1xf32>
    %cst_4 = arith.constant 9.99999974E-6 : f32
    %12 = vector.broadcast %cst_4 : f32 to vector<48x1xf32>
    %13 = arith.addf %11, %12 : vector<48x1xf32>
    %14 = math.rsqrt %13 : vector<48x1xf32>
    %15 = vector.broadcast %14 : vector<48x1xf32> to vector<48x128xf32>
    %16 = arith.mulf %6, %15 : vector<48x128xf32>
    %c0_5 = arith.constant 0 : index
    %c0_6 = arith.constant 0 : index
    %17 = vector.load %arg2[%c0_5, %c0_6] : memref<1x128xf32, #tpu.memory_space<vmem>>, vector<1x128xf32>
    %18 = vector.broadcast %17 : vector<1x128xf32> to vector<48x128xf32>
    %19 = arith.mulf %16, %18 : vector<48x128xf32>
    %c0_7 = arith.constant 0 : index
    %c0_8 = arith.constant 0 : index
    %20 = vector.load %arg3[%c0_7, %c0_8] : memref<1x128xf32, #tpu.memory_space<vmem>>, vector<1x128xf32>
    %21 = vector.broadcast %20 : vector<1x128xf32> to vector<48x128xf32>
    %22 = arith.addf %19, %21 : vector<48x128xf32>
    %23 = arith.truncf %22 : vector<48x128xf32> to vector<48x128xbf16>
    %c0_9 = arith.constant 0 : index
    %c0_10 = arith.constant 0 : index
    %24 = vector.load %arg4[%c0_9, %c0_10] : memref<128x128xbf16, #tpu.memory_space<vmem>>, vector<128x128xbf16>
    %cst_11 = arith.constant dense<0.000000e+00> : vector<48x128xf32>
    %25 = tpu.matmul %23, %24, %cst_11 {dimension_numbers = #tpu.dot_dimension_numbers<[1], [0], [0], [1], [0, 0, 1, 1], [], []>} : vector<48x128xbf16>, vector<128x128xbf16>, vector<48x128xf32> -> vector<48x128xf32>
    %c0_12 = arith.constant 0 : index
    %c0_13 = arith.constant 0 : index
    %26 = vector.load %arg5[%c0_12, %c0_13] : memref<1x128xf32, #tpu.memory_space<vmem>>, vector<1x128xf32>
    %27 = vector.broadcast %26 : vector<1x128xf32> to vector<48x128xf32>
    %28 = arith.addf %25, %27 : vector<48x128xf32>
    %c0_14 = arith.constant 0 : index
    %c0_15 = arith.constant 0 : index
    %29 = vector.load %arg6[%c0_14, %c0_15] : memref<48x128xf32, #tpu.memory_space<vmem>>, vector<48x128xf32>
    tpu.vector_store %arg6[%c0_14, %c0_15], %28 {strides = array<i32>} : memref<48x128xf32, #tpu.memory_space<vmem>>, vector<48x128xf32>,
    return
  }
  func.func @transform_0(%arg0: i32) -> (i32, i32) {
    %c0_i32 = arith.constant 0 : i32
    %c0_i32_0 = arith.constant 0 : i32
    return %arg0, %c0_i32 : i32, i32
  }
  func.func @transform_1(%arg0: i32) -> (i32, i32) {
    %c0_i32 = arith.constant 0 : i32
    %c0_i32_0 = arith.constant 0 : i32
    %c0_i32_1 = arith.constant 0 : i32
    return %c0_i32, %c0_i32_0 : i32, i32
  }
  func.func @transform_2(%arg0: i32) -> (i32, i32) {
    %c0_i32 = arith.constant 0 : i32
    %c0_i32_0 = arith.constant 0 : i32
    %c0_i32_1 = arith.constant 0 : i32
    return %c0_i32, %c0_i32_0 : i32, i32
  }
  func.func @transform_3(%arg0: i32) -> (i32, i32) {
    %c0_i32 = arith.constant 0 : i32
    %c0_i32_0 = arith.constant 0 : i32
    %c0_i32_1 = arith.constant 0 : i32
    return %c0_i32, %c0_i32_0 : i32, i32
  }
  func.func @transform_4(%arg0: i32) -> (i32, i32) {
    %c0_i32 = arith.constant 0 : i32
    %c0_i32_0 = arith.constant 0 : i32
    %c0_i32_1 = arith.constant 0 : i32
    return %c0_i32, %c0_i32_0 : i32, i32
  }
  func.func @transform_5(%arg0: i32) -> (i32, i32) {
    %c0_i32 = arith.constant 0 : i32
    %c0_i32_0 = arith.constant 0 : i32
    return %arg0, %c0_i32 : i32, i32
  }
}

module attributes {stable_mosaic.version = 11 : i64} {
  func.func @prenorm_linear_kernel(%arg0: i32, %arg1: memref<48x128xf32, #tpu.memory_space<vmem>>, %arg2: memref<1x128xf32, #tpu.memory_space<vmem>>, %arg3: memref<1x128xf32, #tpu.memory_space<vmem>>, %arg4: memref<128x128xbf16, #tpu.memory_space<vmem>>, %arg5: memref<1x128xf32, #tpu.memory_space<vmem>>, %arg6: memref<48x128xf32, #tpu.memory_space<vmem>>) attributes {dimension_semantics = [#tpu.dimension_semantics<parallel>], iteration_bounds = array<i64: 9>, scalar_prefetch = 0 : i64, scratch_operands = 0 : i64, tpu.core_type = #tpu.core_type<tc>, window_params = [{transform_indices = @transform_0, window_bounds = array<i64: 48, 128>}, {pipeline_mode = #tpu.pipeline_mode<synchronous>, transform_indices = @transform_1, window_bounds = array<i64: 1, 128>}, {pipeline_mode = #tpu.pipeline_mode<synchronous>, transform_indices = @transform_2, window_bounds = array<i64: 1, 128>}, {pipeline_mode = #tpu.pipeline_mode<synchronous>, transform_indices = @transform_3, window_bounds = array<i64: 128, 128>}, {pipeline_mode = #tpu.pipeline_mode<synchronous>, transform_indices = @transform_4, window_bounds = array<i64: 1, 128>}, {transform_indices = @transform_5, window_bounds = array<i64: 48, 128>}]} {
    %c0 = arith.constant 0 : index
    %c0_0 = arith.constant 0 : index
    %0 = vector.load %arg1[%c0, %c0_0] : memref<48x128xf32, #tpu.memory_space<vmem>>, vector<48x128xf32>
    %cst = arith.constant dense<0.000000e+00> : vector<48xf32>
    %1 = vector.multi_reduction <add>, %0, %cst [1] : vector<48x128xf32> to vector<48xf32>
    %2 = vector.shape_cast %1 : vector<48xf32> to vector<48x1xf32>
    %cst_1 = arith.constant 1.280000e+02 : f32
    %3 = vector.broadcast %cst_1 : f32 to vector<48x1xf32>
    %4 = arith.divf %2, %3 : vector<48x1xf32>
    %5 = vector.broadcast %4 : vector<48x1xf32> to vector<48x128xf32>
    %6 = arith.subf %0, %5 : vector<48x128xf32>
    %7 = arith.mulf %6, %6 : vector<48x128xf32>
    %cst_2 = arith.constant dense<0.000000e+00> : vector<48xf32>
    %8 = vector.multi_reduction <add>, %7, %cst_2 [1] : vector<48x128xf32> to vector<48xf32>
    %9 = vector.shape_cast %8 : vector<48xf32> to vector<48x1xf32>
    %cst_3 = arith.constant 1.280000e+02 : f32
    %10 = vector.broadcast %cst_3 : f32 to vector<48x1xf32>
    %11 = arith.divf %9, %10 : vector<48x1xf32>
    %cst_4 = arith.constant 9.99999974E-6 : f32
    %12 = vector.broadcast %cst_4 : f32 to vector<48x1xf32>
    %13 = arith.addf %11, %12 : vector<48x1xf32>
    %14 = math.rsqrt %13 : vector<48x1xf32>
    %15 = vector.broadcast %14 : vector<48x1xf32> to vector<48x128xf32>
    %16 = arith.mulf %6, %15 : vector<48x128xf32>
    %c0_5 = arith.constant 0 : index
    %c0_6 = arith.constant 0 : index
    %17 = vector.load %arg2[%c0_5, %c0_6] : memref<1x128xf32, #tpu.memory_space<vmem>>, vector<1x128xf32>
    %18 = vector.broadcast %17 : vector<1x128xf32> to vector<48x128xf32>
    %19 = arith.mulf %16, %18 : vector<48x128xf32>
    %c0_7 = arith.constant 0 : index
    %c0_8 = arith.constant 0 : index
    %20 = vector.load %arg3[%c0_7, %c0_8] : memref<1x128xf32, #tpu.memory_space<vmem>>, vector<1x128xf32>
    %21 = vector.broadcast %20 : vector<1x128xf32> to vector<48x128xf32>
    %22 = arith.addf %19, %21 : vector<48x128xf32>
    %23 = arith.truncf %22 : vector<48x128xf32> to vector<48x128xbf16>
    %c0_9 = arith.constant 0 : index
    %c0_10 = arith.constant 0 : index
    %24 = vector.load %arg4[%c0_9, %c0_10] : memref<128x128xbf16, #tpu.memory_space<vmem>>, vector<128x128xbf16>
    %cst_11 = arith.constant dense<0.000000e+00> : vector<48x128xf32>
    %25 = tpu.matmul %23, %24, %cst_11 {dimension_numbers = #tpu.dot_dimension_numbers<[1], [0], [0], [1], [0, 0, 1, 1], [], []>} : vector<48x128xbf16>, vector<128x128xbf16>, vector<48x128xf32> -> vector<48x128xf32>
    %c0_12 = arith.constant 0 : index
    %c0_13 = arith.constant 0 : index
    %26 = vector.load %arg5[%c0_12, %c0_13] : memref<1x128xf32, #tpu.memory_space<vmem>>, vector<1x128xf32>
    %27 = vector.broadcast %26 : vector<1x128xf32> to vector<48x128xf32>
    %28 = arith.addf %25, %27 : vector<48x128xf32>
    %c0_14 = arith.constant 0 : index
    %c0_15 = arith.constant 0 : index
    %29 = vector.load %arg6[%c0_14, %c0_15] : memref<48x128xf32, #tpu.memory_space<vmem>>, vector<48x128xf32>
    tpu.vector_store %arg6[%c0_14, %c0_15], %28 {strides = array<i32>} : memref<48x128xf32, #tpu.memory_space<vmem>>, vector<48x128xf32>,
    return
  }
  func.func @transform_0(%arg0: i32) -> (i32, i32) {
    %c0_i32 = arith.constant 0 : i32
    %c0_i32_0 = arith.constant 0 : i32
    return %arg0, %c0_i32 : i32, i32
  }
  func.func @transform_1(%arg0: i32) -> (i32, i32) {
    %c0_i32 = arith.constant 0 : i32
    %c0_i32_0 = arith.constant 0 : i32
    %c0_i32_1 = arith.constant 0 : i32
    return %c0_i32, %c0_i32_0 : i32, i32
  }
  func.func @transform_2(%arg0: i32) -> (i32, i32) {
    %c0_i32 = arith.constant 0 : i32
    %c0_i32_0 = arith.constant 0 : i32
    %c0_i32_1 = arith.constant 0 : i32
    return %c0_i32, %c0_i32_0 : i32, i32
  }
  func.func @transform_3(%arg0: i32) -> (i32, i32) {
    %c0_i32 = arith.constant 0 : i32
    %c0_i32_0 = arith.constant 0 : i32
    %c0_i32_1 = arith.constant 0 : i32
    return %c0_i32, %c0_i32_0 : i32, i32
  }
  func.func @transform_4(%arg0: i32) -> (i32, i32) {
    %c0_i32 = arith.constant 0 : i32
    %c0_i32_0 = arith.constant 0 : i32
    %c0_i32_1 = arith.constant 0 : i32
    return %c0_i32, %c0_i32_0 : i32, i32
  }
  func.func @transform_5(%arg0: i32) -> (i32, i32) {
    %c0_i32 = arith.constant 0 : i32
    %c0_i32_0 = arith.constant 0 : i32
    return %arg0, %c0_i32 : i32, i32
  }
}

</mosaic_0001>

<llo_original>
// kernel: tpu_custom_call.1
$region0: #{tpu_custom_call.1}
  #allocation0 [shape = 'u32[]', space=smem, size = 0x4, offset = 0x4, fixed_abs, tag = 'smem constant byte address 0x4 - core index']
  #allocation1 [shape = 'u32[72,128]{1,0:T(1,128)}', space=vmem, size = 0x9000, scoped, tag = 'internal scratch']
  %s0 = inlined_call_operand.hbm [shape: f32[432,128], index: 0, kind: input, shape index: {}]
  %s1 = inlined_call_operand.hbm [shape: f32[1,128], index: 1, kind: input, shape index: {}]
  %s2 = inlined_call_operand.vmem [shape: f32[1,128], index: 2, kind: input, shape index: {}]
  %s3 = inlined_call_operand.hbm [shape: bf16[128,128], index: 3, kind: input, shape index: {}]
  %s4 = inlined_call_operand.vmem [shape: f32[1,128], index: 4, kind: input, shape index: {}]
  %s5 = inlined_call_operand.hbm [shape: f32[432,128], index: 5, kind: output, shape index: {}]
  %s6 = sld [smem:[#allocation0]]
  $region65: #{tpu_custom_call.1} parent=0
    _
  %s8 = ssub.s32 1, %s6
  %s9 = scalar_select 0, %s8, %s6
  $region1: #{tpu_custom_call.1} parent=0
    #allocation2 [shape = 'u8[49152]{0}', space=vmem, size = 0xc000, scoped, tag = 'input window, operand 0']
    #allocation3 [shape = 's32[2]{0}', space=sflag, size = 0x8, scoped, tag = 'scoped memory for tpu_custom_call.1']
    #allocation4 [shape = 's32[2]{0}', space=sflag, size = 0x8, scoped, tag = 'scoped memory for tpu_custom_call.1']
    #allocation5 [shape = 'u8[512]{0}', space=vmem, size = 0x400, scoped, tag = 'input window, operand 1, single buffered']
    #allocation6 [shape = 's32[1]{0}', space=sflag, size = 0x4, scoped, tag = 'scoped memory for tpu_custom_call.1']
    #allocation7 [shape = 'u8[32768]{0}', space=vmem, size = 0x8000, scoped, tag = 'input window, operand 3, single buffered']
    #allocation8 [shape = 'u8[49152]{0}', space=vmem, size = 0xc000, scoped, tag = 'output window, operand 0']
    %10 = vsyncpa [#allocation3], 0
    %s11 = scalar_lea.sflag [#allocation3], 1
    %12 = vsyncpa %s11, 0
    %13 = vsyncpa [#allocation6], 0
    %14 = vsyncpa [#allocation4], 0
    %s15 = scalar_lea.sflag [#allocation4], 1
    %16 = vsyncpa %s15, 0
    loop: start=0, step=1, limit=11
    $region2: #{tpu_custom_call.1} parent=1 // loop_pre_header
      _
    $region3: #{tpu_custom_call.1} parent=1 // loop_header
      %s18 = sphi 0, %s22
      %p19 = scmp.ge.s32.totalorder %s18, 11
      %s28 = sphi 0, %s30
      %s31 = sphi 0, %s28
      %s32 = sphi 0, %s31
      %s48 = sphi 0, %s32
      %s52 = sphi 0, %s52
      %s54 = sphi 0, %s52
      %s55 = sphi 0, %s54
      %s69 = sphi 0, %s55
      %s73 = sphi 0, %s73
      %s75 = sphi 0, %s73
      %s76 = sphi 0, %s75
      %s90 = sphi 0, %s76
      %s94 = sphi 0, %s94
      %s96 = sphi 0, %s94
      %s97 = sphi 0, %s96
      %s111 = sphi 0, %s97
      %s115 = sphi 0, %s115
      %s117 = sphi 0, %s115
      %s118 = sphi 0, %s117
      %s132 = sphi 0, %s118
      %s138 = sphi 0, %s140
      %s141 = sphi 0, %s138
      %s142 = sphi 0, %s141
      %s158 = sphi 0, %s142
    $region4: #{tpu_custom_call.1} parent=1 // loop_header_branch
      %21 = sbr.rel (%p19) target = $region8
    $region5: #{tpu_custom_call.1} parent=1 // loop_body
      %s23 = ssub.s32 %s18, 1
      %s24 = ssub.s32 %s18, 2
      %s25 = sadd.s32 %s18, 1
      %s26 = ssub.s32 %s18, %s25
      %p27 = scmp.eq.s32.totalorder %s26, 0
      %s29 = sadd.s32 %s28, 1
      %s30 = scalar_select %p27, %s28, %s29
      %p33 = pneg %p27
      %p34 = scmp.eq.s32.totalorder %s18, 8
      %p35 = por %p33, %p34
      %p36 = scmp.ne.s32.totalorder %s28, %s31
      %p37 = scmp.eq.s32.totalorder %s18, 0
      %p38 = por %p36, %p37
      %p39 = scmp.ne.s32.totalorder %s28, %s31
      %p40 = scmp.eq.s32.totalorder %s23, 8
      %p41 = por %p39, %p40
      %p42 = scmp.ne.s32.totalorder %s31, %s32
      %p43 = scmp.eq.s32.totalorder %s23, 0
      %p44 = por %p42, %p43
      %p45 = scmp.ne.s32.totalorder %s31, %s32
      %p46 = scmp.eq.s32.totalorder %s24, 8
      %p47 = por %p45, %p46
      %p49 = scmp.ne.s32.totalorder %s32, %s48
      %p50 = scmp.eq.s32.totalorder %s24, 0
      %p51 = por %p49, %p50
      %s53 = sadd.s32 %s52, 1
      %p56 = scmp.eq.s32.totalorder %s18, 8
      %p57 = scmp.ne.s32.totalorder %s52, %s54
      %p58 = scmp.eq.s32.totalorder %s18, 0
      %p59 = por %p57, %p58
      %p60 = scmp.ne.s32.totalorder %s52, %s54
      %p61 = scmp.eq.s32.totalorder %s23, 8
      %p62 = por %p60, %p61
      %p63 = scmp.ne.s32.totalorder %s54, %s55
      %p64 = scmp.eq.s32.totalorder %s23, 0
      %p65 = por %p63, %p64
      %p66 = scmp.ne.s32.totalorder %s54, %s55
      %p67 = scmp.eq.s32.totalorder %s24, 8
      %p68 = por %p66, %p67
      %p70 = scmp.ne.s32.totalorder %s55, %s69
      %p71 = scmp.eq.s32.totalorder %s24, 0
      %p72 = por %p70, %p71
      %s74 = sadd.s32 %s73, 1
      %p77 = scmp.eq.s32.totalorder %s18, 8
      %p78 = scmp.ne.s32.totalorder %s73, %s75
      %p79 = scmp.eq.s32.totalorder %s18, 0
      %p80 = por %p78, %p79
      %p81 = scmp.ne.s32.totalorder %s73, %s75
      %p82 = scmp.eq.s32.totalorder %s23, 8
      %p83 = por %p81, %p82
      %p84 = scmp.ne.s32.totalorder %s75, %s76
      %p85 = scmp.eq.s32.totalorder %s23, 0
      %p86 = por %p84, %p85
      %p87 = scmp.ne.s32.totalorder %s75, %s76
      %p88 = scmp.eq.s32.totalorder %s24, 8
      %p89 = por %p87, %p88
      %p91 = scmp.ne.s32.totalorder %s76, %s90
      %p92 = scmp.eq.s32.totalorder %s24, 0
      %p93 = por %p91, %p92
      %s95 = sadd.s32 %s94, 1
      %p98 = scmp.eq.s32.totalorder %s18, 8
      %p99 = scmp.ne.s32.totalorder %s94, %s96
      %p100 = scmp.eq.s32.totalorder %s18, 0
      %p101 = por %p99, %p100
      %p102 = scmp.ne.s32.totalorder %s94, %s96
      %p103 = scmp.eq.s32.totalorder %s23, 8
      %p104 = por %p102, %p103
      %p105 = scmp.ne.s32.totalorder %s96, %s97
      %p106 = scmp.eq.s32.totalorder %s23, 0
      %p107 = por %p105, %p106
      %p108 = scmp.ne.s32.totalorder %s96, %s97
      %p109 = scmp.eq.s32.totalorder %s24, 8
      %p110 = por %p108, %p109
      %p112 = scmp.ne.s32.totalorder %s97, %s111
      %p113 = scmp.eq.s32.totalorder %s24, 0
      %p114 = por %p112, %p113
      %s116 = sadd.s32 %s115, 1
      %p119 = scmp.eq.s32.totalorder %s18, 8
      %p120 = scmp.ne.s32.totalorder %s115, %s117
      %p121 = scmp.eq.s32.totalorder %s18, 0
      %p122 = por %p120, %p121
      %p123 = scmp.ne.s32.totalorder %s115, %s117
      %p124 = scmp.eq.s32.totalorder %s23, 8
      %p125 = por %p123, %p124
      %p126 = scmp.ne.s32.totalorder %s117, %s118
      %p127 = scmp.eq.s32.totalorder %s23, 0
      %p128 = por %p126, %p127
      %p129 = scmp.ne.s32.totalorder %s117, %s118
      %p130 = scmp.eq.s32.totalorder %s24, 8
      %p131 = por %p129, %p130
      %p133 = scmp.ne.s32.totalorder %s118, %s132
      %p134 = scmp.eq.s32.totalorder %s24, 0
      %p135 = por %p133, %p134
      %s136 = ssub.s32 %s18, %s25
      %p137 = scmp.eq.s32.totalorder %s136, 0
      %s139 = sadd.s32 %s138, 1
      %s140 = scalar_select %p137, %s138, %s139
      %p143 = pneg %p137
      %p144 = scmp.eq.s32.totalorder %s18, 8
      %p145 = por %p143, %p144
      %p146 = scmp.ne.s32.totalorder %s138, %s141
      %p147 = scmp.eq.s32.totalorder %s18, 0
      %p148 = por %p146, %p147
      %p149 = scmp.ne.s32.totalorder %s138, %s141
      %p150 = scmp.eq.s32.totalorder %s23, 8
      %p151 = por %p149, %p150
      %p152 = scmp.ne.s32.totalorder %s141, %s142
      %p153 = scmp.eq.s32.totalorder %s23, 0
      %p154 = por %p152, %p153
      %p155 = scmp.ne.s32.totalorder %s141, %s142
      %p156 = scmp.eq.s32.totalorder %s24, 8
      %p157 = por %p155, %p156
      %p159 = scmp.ne.s32.totalorder %s142, %s158
      %p160 = scmp.eq.s32.totalorder %s24, 0
      %p161 = por %p159, %p160
      %p162 = scmp.le.s32.totalorder 1, %s18
      %p163 = scmp.lt.s32.totalorder %s18, 10
      %p164 = pnand %p162, %p163
      %p165 = pneg %p164
      // Predicated region
      $region9: #{tpu_custom_call.1} parent=5 // pred_check
        _
      $region10: #{tpu_custom_call.1} parent=5 // pred_check_branch
        %167 = sbr.rel (%p164) target = $region12
      $region11: #{tpu_custom_call.1} parent=5 // pred_region
        %s168 = ssub.s32 %s18, 1
        // Predicated region
        $region13: #{tpu_custom_call.1} parent=11 // pred_check
          %p169 = pneg %p65
        $region14: #{tpu_custom_call.1} parent=11 // pred_check_branch
          %171 = sbr.rel (%p169) target = $region16
        $region15: #{tpu_custom_call.1} parent=11 // pred_region
          %173 = vsyncadd [#allocation6], 0
          %s175 = sshll.u32 %s1, 4
          %s176 = int_to_ptr.hbm [resolvable:$true] %s175
          %s177 = sshll.u32 [#allocation5], 4
          %s178 = int_to_ptr.vmem [resolvable:$true] %s177
          %180 = dma.hbm_to_vmem [thread:$0]  %s176, 16, %s178, [#allocation6]
        $region16: #{tpu_custom_call.1} parent=11 // pred_fallthru
          _
        // Predicated region
        $region17: #{tpu_custom_call.1} parent=11 // pred_check
          %p181 = pneg %p86
        $region18: #{tpu_custom_call.1} parent=11 // pred_check_branch
          %183 = sbr.rel (%p181) target = $region20
        $region19: #{tpu_custom_call.1} parent=11 // pred_region
          _
        $region20: #{tpu_custom_call.1} parent=11 // pred_fallthru
          _
        // Predicated region
        $region21: #{tpu_custom_call.1} parent=11 // pred_check
          %p184 = pneg %p107
        $region22: #{tpu_custom_call.1} parent=11 // pred_check_branch
          %186 = sbr.rel (%p184) target = $region24
        $region23: #{tpu_custom_call.1} parent=11 // pred_region
          %188 = vsyncadd [#allocation6], 0
          %s189 = sshll.u32 %s3, 4
          %s190 = int_to_ptr.hbm [resolvable:$true] %s189
          %s191 = sshll.u32 [#allocation7], 4
          %s192 = int_to_ptr.vmem [resolvable:$true] %s191
          %197 = dma.hbm_to_vmem [thread:$0]  %s190, 1024, %s192, [#allocation6], 64, 64, 4
        $region24: #{tpu_custom_call.1} parent=11 // pred_fallthru
          _
        // Predicated region
        $region25: #{tpu_custom_call.1} parent=11 // pred_check
          %p198 = pneg %p128
        $region26: #{tpu_custom_call.1} parent=11 // pred_check_branch
          %200 = sbr.rel (%p198) target = $region28
        $region27: #{tpu_custom_call.1} parent=11 // pred_region
          _
        $region28: #{tpu_custom_call.1} parent=11 // pred_fallthru
          _
      $region12: #{tpu_custom_call.1} parent=5 // pred_fallthru
        _
      %p201 = scmp.lt.s32.totalorder %s18, 9
      // Predicated region
      $region29: #{tpu_custom_call.1} parent=5 // pred_check
        %p202 = pneg %p201
      $region30: #{tpu_custom_call.1} parent=5 // pred_check_branch
        %204 = sbr.rel (%p202) target = $region32
      $region31: #{tpu_custom_call.1} parent=5 // pred_region
        // Predicated region
        $region33: #{tpu_custom_call.1} parent=31 // pred_check
          %p205 = pneg %p38
        $region34: #{tpu_custom_call.1} parent=31 // pred_check_branch
          %207 = sbr.rel (%p205) target = $region36
        $region35: #{tpu_custom_call.1} parent=31 // pred_region
          %s208 = sand.u32 %s28, 1
          %s209 = scalar_lea.sflag [#allocation3], %s208
          %s210 = sand.u32 %s28, 1
          %s211 = smul.addr %s210, 48
          %s212 = scalar_lea.vmem [#allocation2], %s211
          %s213 = smul.u32 6, %s18
          %215 = vsyncadd %s209, 0
          %s216 = smul.addr %s213, 8
          %s217 = scalar_lea.hbm %s0, %s216
          %s218 = sshll.u32 %s217, 4
          %s219 = int_to_ptr.hbm [resolvable:$true] %s218
          %s220 = sshll.u32 %s212, 4
          %s221 = int_to_ptr.vmem [resolvable:$true] %s220
          %226 = dma.hbm_to_vmem [thread:$0]  %s219, 768, %s221, %s209, 128, 128, 8
        $region36: #{tpu_custom_call.1} parent=31 // pred_fallthru
          _
      $region32: #{tpu_custom_call.1} parent=5 // pred_fallthru
        _
      %p227 = scmp.le.s32.totalorder 1, %s18
      %p228 = scmp.lt.s32.totalorder %s18, 10
      %p229 = pnand %p227, %p228
      %p230 = pneg %p229
      // Predicated region
      $region37: #{tpu_custom_call.1} parent=5 // pred_check
        _
      $region38: #{tpu_custom_call.1} parent=5 // pred_check_branch
        %232 = sbr.rel (%p229) target = $region40
      $region39: #{tpu_custom_call.1} parent=5 // pred_region
        %s233 = ssub.s32 %s18, 1
        %s234 = sand.u32 %s31, 1
        %s235 = scalar_lea.sflag [#allocation3], %s234
        %s236 = sand.u32 %s31, 1
        %s237 = smul.addr %s236, 48
        %s238 = scalar_lea.vmem [#allocation2], %s237
        // Predicated region
        $region41: #{tpu_custom_call.1} parent=39 // pred_check
          %p239 = pneg %p44
        $region42: #{tpu_custom_call.1} parent=39 // pred_check_branch
          %241 = sbr.rel (%p239) target = $region44
        $region43: #{tpu_custom_call.1} parent=39 // pred_region
          %243 = dma.done %s235, 768
        $region44: #{tpu_custom_call.1} parent=39 // pred_fallthru
          _
        // Predicated region
        $region45: #{tpu_custom_call.1} parent=39 // pred_check
          %p244 = pneg %p65
        $region46: #{tpu_custom_call.1} parent=39 // pred_check_branch
          %246 = sbr.rel (%p244) target = $region48
        $region47: #{tpu_custom_call.1} parent=39 // pred_region
          %248 = dma.done [#allocation6], 16
        $region48: #{tpu_custom_call.1} parent=39 // pred_fallthru
          _
        // Predicated region
        $region49: #{tpu_custom_call.1} parent=39 // pred_check
          %p249 = pneg %p107
        $region50: #{tpu_custom_call.1} parent=39 // pred_check_branch
          %251 = sbr.rel (%p249) target = $region52
        $region51: #{tpu_custom_call.1} parent=39 // pred_region
          %253 = dma.done [#allocation6], 1024
        $region52: #{tpu_custom_call.1} parent=39 // pred_fallthru
          _
        %s254 = sand.u32 %s31, 1
        %s255 = scalar_lea.sflag [#allocation3], %s254
        %s256 = sand.u32 %s31, 1
        %s257 = smul.addr %s256, 48
        %s258 = scalar_lea.vmem [#allocation2], %s257
        %p259 = pneg %p44
        %p260 = pneg %p41
        %p261 = pneg %p65
        %p262 = pneg %p62
        %p263 = pneg %p86
        %p264 = pneg %p83
        %p265 = pneg %p107
        %p266 = pneg %p104
        %p267 = pneg %p128
        %p268 = pneg %p125
        %p269 = pneg %p154
        %p270 = pneg %p151
        %s271 = sand.u32 %s141, 1
        %s272 = scalar_lea.sflag [#allocation4], %s271
        %s273 = sand.u32 %s141, 1
        %s274 = smul.addr %s273, 48
        %s275 = scalar_lea.vmem [#allocation8], %s274
        %s276 = smul.u32 6, %s23
        %s277 = smul.u32 6, %s23
        %v278 = vld [vmem:[%s238] sm:$0xff]
        %v279 = vld [vmem:[%s238 + $0x8] sm:$0xff]
        %v280 = vld [vmem:[%s238 + $0x10] sm:$0xff]
        %v281 = vld [vmem:[%s238 + $0x18] sm:$0xff]
        %v282 = vld [vmem:[%s238 + $0x20] sm:$0xff]
        %v283 = vld [vmem:[%s238 + $0x28] sm:$0xff]
        %284 = vadd.xlane.f32.xlu0 %v278
        %v285 = vpop.xlane.xlu0 %284
        %286 = vadd.xlane.f32.xlu0 %v279
        %v287 = vpop.xlane.xlu0 %286
        %288 = vadd.xlane.f32.xlu0 %v280
        %v289 = vpop.xlane.xlu0 %288
        %290 = vadd.xlane.f32.xlu0 %v281
        %v291 = vpop.xlane.xlu0 %290
        %292 = vadd.xlane.f32.xlu0 %v282
        %v293 = vpop.xlane.xlu0 %292
        %294 = vadd.xlane.f32.xlu0 %v283
        %v295 = vpop.xlane.xlu0 %294
        %v296 = vrcp.pop 128.0
        %v297 = vmul.f32 128.0, %v296
        %v298 = vsub.f32 1.0, %v297
        %v299 = vmul.f32 %v296, %v298
        %v300 = vadd.f32 %v296, %v299
        %vm301 = vweird.f32 %v296
        %v302 = vsel %vm301, %v296, %v300
        %v303 = vmul.f32 %v285, %v302
        %v304 = vmul.f32 %v287, %v302
        %v305 = vmul.f32 %v289, %v302
        %v306 = vmul.f32 %v291, %v302
        %v307 = vmul.f32 %v293, %v302
        %v308 = vmul.f32 %v295, %v302
        %v309 = vsub.f32 %v278, %v303
        %v310 = vsub.f32 %v279, %v304
        %v311 = vsub.f32 %v280, %v305
        %v312 = vsub.f32 %v281, %v306
        %v313 = vsub.f32 %v282, %v307
        %v314 = vsub.f32 %v283, %v308
        %v315 = vmul.f32 %v309, %v309
        %v316 = vmul.f32 %v310, %v310
        %v317 = vmul.f32 %v311, %v311
        %v318 = vmul.f32 %v312, %v312
        %v319 = vmul.f32 %v313, %v313
        %v320 = vmul.f32 %v314, %v314
        %321 = vadd.xlane.f32.xlu0 %v315
        %v322 = vpop.xlane.xlu0 %321
        %323 = vadd.xlane.f32.xlu0 %v316
        %v324 = vpop.xlane.xlu0 %323
        %325 = vadd.xlane.f32.xlu0 %v317
        %v326 = vpop.xlane.xlu0 %325
        %327 = vadd.xlane.f32.xlu0 %v318
        %v328 = vpop.xlane.xlu0 %327
        %329 = vadd.xlane.f32.xlu0 %v319
        %v330 = vpop.xlane.xlu0 %329
        %331 = vadd.xlane.f32.xlu0 %v320
        %v332 = vpop.xlane.xlu0 %331
        %v333 = vmul.f32 %v322, %v302
        %v334 = vmul.f32 %v324, %v302
        %v335 = vmul.f32 %v326, %v302
        %v336 = vmul.f32 %v328, %v302
        %v337 = vmul.f32 %v330, %v302
        %v338 = vmul.f32 %v332, %v302
        %v339 = vadd.f32 %v333, 1e-05
        %v340 = vadd.f32 %v334, 1e-05
        %v341 = vadd.f32 %v335, 1e-05
        %v342 = vadd.f32 %v336, 1e-05
        %v343 = vadd.f32 %v337, 1e-05
        %v344 = vadd.f32 %v338, 1e-05
        %v345 = vrsqrt.pop %v339
        %v346 = vmul.f32 %v345, %v339
        %v347 = vmul.f32 %v346, %v345
        %v348 = vmul.f32 0.5, %v347
        %v349 = vsub.f32 1.5, %v348
        %v350 = vmul.f32 %v345, %v349
        %vm351 = vweird.f32 %v339
        %vm352 = vweird.f32 %v345
        %vm353 = vmor %vm351, %vm352
        %v354 = vsel %vm353, %v345, %v350
        %v355 = vrsqrt.pop %v340
        %v356 = vmul.f32 %v355, %v340
        %v357 = vmul.f32 %v356, %v355
        %v358 = vmul.f32 0.5, %v357
        %v359 = vsub.f32 1.5, %v358
        %v360 = vmul.f32 %v355, %v359
        %vm361 = vweird.f32 %v340
        %vm362 = vweird.f32 %v355
        %vm363 = vmor %vm361, %vm362
        %v364 = vsel %vm363, %v355, %v360
        %v365 = vrsqrt.pop %v341
        %v366 = vmul.f32 %v365, %v341
        %v367 = vmul.f32 %v366, %v365
        %v368 = vmul.f32 0.5, %v367
        %v369 = vsub.f32 1.5, %v368
        %v370 = vmul.f32 %v365, %v369
        %vm371 = vweird.f32 %v341
        %vm372 = vweird.f32 %v365
        %vm373 = vmor %vm371, %vm372
        %v374 = vsel %vm373, %v365, %v370
        %v375 = vrsqrt.pop %v342
        %v376 = vmul.f32 %v375, %v342
        %v377 = vmul.f32 %v376, %v375
        %v378 = vmul.f32 0.5, %v377
        %v379 = vsub.f32 1.5, %v378
        %v380 = vmul.f32 %v375, %v379
        %vm381 = vweird.f32 %v342
        %vm382 = vweird.f32 %v375
        %vm383 = vmor %vm381, %vm382
        %v384 = vsel %vm383, %v375, %v380
        %v385 = vrsqrt.pop %v343
        %v386 = vmul.f32 %v385, %v343
        %v387 = vmul.f32 %v386, %v385
        %v388 = vmul.f32 0.5, %v387
        %v389 = vsub.f32 1.5, %v388
        %v390 = vmul.f32 %v385, %v389
        %vm391 = vweird.f32 %v343
        %vm392 = vweird.f32 %v385
        %vm393 = vmor %vm391, %vm392
        %v394 = vsel %vm393, %v385, %v390
        %v395 = vrsqrt.pop %v344
        %v396 = vmul.f32 %v395, %v344
        %v397 = vmul.f32 %v396, %v395
        %v398 = vmul.f32 0.5, %v397
        %v399 = vsub.f32 1.5, %v398
        %v400 = vmul.f32 %v395, %v399
        %vm401 = vweird.f32 %v344
        %vm402 = vweird.f32 %v395
        %vm403 = vmor %vm401, %vm402
        %v404 = vsel %vm403, %v395, %v400
        %v405 = vmul.f32 %v309, %v354
        %v406 = vmul.f32 %v310, %v364
        %v407 = vmul.f32 %v311, %v374
        %v408 = vmul.f32 %v312, %v384
        %v409 = vmul.f32 %v313, %v394
        %v410 = vmul.f32 %v314, %v404
        %v411 = vld [vmem:[#allocation5] sm:$0x1]
        %v413 = vperm.slane %v411, 0
        %v415 = vmul.f32 %v405, %v413
        %v416 = vmul.f32 %v406, %v413
        %v417 = vmul.f32 %v407, %v413
        %v418 = vmul.f32 %v408, %v413
        %v419 = vmul.f32 %v409, %v413
        %v420 = vmul.f32 %v410, %v413
        %v421 = vld [vmem:[%s2] sm:$0x1]
        %v423 = vperm.slane %v421, 0
        %v425 = vadd.f32 %v415, %v423
        %v426 = vadd.f32 %v416, %v423
        %v427 = vadd.f32 %v417, %v423
        %v428 = vadd.f32 %v418, %v423
        %v429 = vadd.f32 %v419, %v423
        %v430 = vadd.f32 %v420, %v423
        %v431 = vpack.c.bf16 %v426, %v425
        %v432 = vpack.c.bf16 %v428, %v427
        %v433 = vpack.c.bf16 %v430, %v429
        %v434 = vld [vmem:[#allocation7] sm:$0xf]
        %v435 = vld [vmem:[#allocation7 + $0x4] sm:$0xf]
        %v436 = vld [vmem:[#allocation7 + $0x8] sm:$0xf]
        %v437 = vld [vmem:[#allocation7 + $0xc] sm:$0xf]
        %v438 = vld [vmem:[#allocation7 + $0x10] sm:$0xf]
        %v439 = vld [vmem:[#allocation7 + $0x14] sm:$0xf]
        %v440 = vld [vmem:[#allocation7 + $0x18] sm:$0xf]
        %v441 = vld [vmem:[#allocation7 + $0x1c] sm:$0xf]
        %v442 = vld [vmem:[#allocation7 + $0x20] sm:$0xf]
        %v443 = vld [vmem:[#allocation7 + $0x24] sm:$0xf]
        %v444 = vld [vmem:[#allocation7 + $0x28] sm:$0xf]
        %v445 = vld [vmem:[#allocation7 + $0x2c] sm:$0xf]
        %v446 = vld [vmem:[#allocation7 + $0x30] sm:$0xf]
        %v447 = vld [vmem:[#allocation7 + $0x34] sm:$0xf]
        %v448 = vld [vmem:[#allocation7 + $0x38] sm:$0xf]
        %v449 = vld [vmem:[#allocation7 + $0x3c] sm:$0xf]
        %v450 = vld [vmem:[%s4] sm:$0x1]
        %v452 = vperm.slane %v450, 0
        %v470 = vunpack.c.l.b16 %v434
        %v471 = vunpack.c.l.b16 %v435
        %v472 = vunpack.c.l.b16 %v436
        %v473 = vunpack.c.l.b16 %v437
        %v474 = vunpack.c.l.b16 %v438
        %v475 = vunpack.c.l.b16 %v439
        %v476 = vunpack.c.l.b16 %v440
        %v477 = vunpack.c.l.b16 %v441
        %v478 = vunpack.c.l.b16 %v442
        %v479 = vunpack.c.l.b16 %v443
        %v480 = vunpack.c.l.b16 %v444
        %v481 = vunpack.c.l.b16 %v445
        %v482 = vunpack.c.l.b16 %v446
        %v483 = vunpack.c.l.b16 %v447
        %v484 = vunpack.c.l.b16 %v448
        %v485 = vunpack.c.l.b16 %v449
        %v486 = vpack.c.b16 %v471, %v470
        %v487 = vpack.c.b16 %v473, %v472
        %v488 = vpack.c.b16 %v475, %v474
        %v489 = vpack.c.b16 %v477, %v476
        %v490 = vpack.c.b16 %v479, %v478
        %v491 = vpack.c.b16 %v481, %v480
        %v492 = vpack.c.b16 %v483, %v482
        %v493 = vpack.c.b16 %v485, %v484
        %502 = vmatpush.bf16.msra.mxu0 %v493
        %503 = vmatpush.bf16.msra.mxu0 %v492
        %504 = vmatpush.bf16.msra.mxu0 %v491
        %505 = vmatpush.bf16.msra.mxu0 %v490
        %506 = vmatpush.bf16.msra.mxu0 %v489
        %507 = vmatpush.bf16.msra.mxu0 %v488
        %508 = vmatpush.bf16.msra.mxu0 %v487
        %509 = vmatpush.bf16.msra.mxu0 %v486
        %510 = vmatmul.bf16.gmra.mxu0 %v431
        %v511 = vpop.f32.mrf.mxu0
        %v512 = vadd.f32 %v452, %v511
        %v513 = vpop.f32.mrf.mxu0
        %v514 = vadd.f32 %v452, %v513
        %515 = vmatmul.bf16.gmra.mxu0 %v432
        %v516 = vpop.f32.mrf.mxu0
        %v517 = vadd.f32 %v452, %v516
        %v518 = vpop.f32.mrf.mxu0
        %v519 = vadd.f32 %v452, %v518
        %520 = vmatmul.bf16.gmra.mxu0 %v433
        %v521 = vpop.f32.mrf.mxu0
        %v522 = vadd.f32 %v452, %v521
        %v523 = vpop.f32.mrf.mxu0
        %v524 = vadd.f32 %v452, %v523
        %525 = vdwg.mxu0
        %526 = vst [vmem:[%s275] sm:$0xff] %v512
        %527 = vst [vmem:[%s275 + $0x8] sm:$0xff] %v514
        %528 = vst [vmem:[%s275 + $0x10] sm:$0xff] %v517
        %529 = vst [vmem:[%s275 + $0x18] sm:$0xff] %v519
        %530 = vst [vmem:[%s275 + $0x20] sm:$0xff] %v522
        %531 = vst [vmem:[%s275 + $0x28] sm:$0xff] %v524
        %s532 = sand.u32 %s141, 1
        %s533 = scalar_lea.sflag [#allocation4], %s532
        %s534 = sand.u32 %s141, 1
        %s535 = smul.addr %s534, 48
        %s536 = scalar_lea.vmem [#allocation8], %s535
        // Predicated region
        $region53: #{tpu_custom_call.1} parent=39 // pred_check
          %p537 = pneg %p151
        $region54: #{tpu_custom_call.1} parent=39 // pred_check_branch
          %539 = sbr.rel (%p537) target = $region56
        $region55: #{tpu_custom_call.1} parent=39 // pred_region
          %s540 = smul.u32 6, %s23
          %542 = vsyncadd %s533, 0
          %s543 = smul.addr %s540, 8
          %s544 = scalar_lea.hbm %s5, %s543
          %s545 = sshll.u32 %s536, 4
          %s546 = int_to_ptr.vmem [resolvable:$true] %s545
          %s547 = sshll.u32 %s544, 4
          %s548 = int_to_ptr.hbm [resolvable:$true] %s547
          %553 = dma.vmem_to_hbm [thread:$0]  %s546, 768, %s548, %s533, 128, 128, 8
        $region56: #{tpu_custom_call.1} parent=39 // pred_fallthru
          _
      $region40: #{tpu_custom_call.1} parent=5 // pred_fallthru
        _
      %p554 = scmp.le.s32.totalorder 2, %s18
      // Predicated region
      $region57: #{tpu_custom_call.1} parent=5 // pred_check
        %p555 = pneg %p554
      $region58: #{tpu_custom_call.1} parent=5 // pred_check_branch
        %557 = sbr.rel (%p555) target = $region60
      $region59: #{tpu_custom_call.1} parent=5 // pred_region
        %s558 = ssub.s32 %s18, 2
        // Predicated region
        $region61: #{tpu_custom_call.1} parent=59 // pred_check
          %p559 = pneg %p157
        $region62: #{tpu_custom_call.1} parent=59 // pred_check_branch
          %561 = sbr.rel (%p559) target = $region64
        $region63: #{tpu_custom_call.1} parent=59 // pred_region
          %s562 = sand.u32 %s142, 1
          %s563 = scalar_lea.sflag [#allocation4], %s562
          %s564 = sand.u32 %s142, 1
          %s565 = smul.addr %s564, 48
          %s566 = scalar_lea.vmem [#allocation8], %s565
          %568 = dma.done %s563, 768
        $region64: #{tpu_custom_call.1} parent=59 // pred_fallthru
          _
      $region60: #{tpu_custom_call.1} parent=5 // pred_fallthru
        _
    $region6: #{tpu_custom_call.1} parent=1 // loop_footer
      %s22 = sadd.s32 1, %s18
    $region7: #{tpu_custom_call.1} parent=1 // loop_footer_branch
      %17 = sbr.rel target = $region3
    $region8: #{tpu_custom_call.1} parent=1 // loop_exit
      _
    %569 = vsyncpa [#allocation3], 1
    %s570 = scalar_lea.sflag [#allocation3], 1
    %571 = vsyncpa %s570, 1
    %572 = vsyncpa [#allocation6], 1
    %573 = vsyncpa [#allocation4], 1
    %s574 = scalar_lea.sflag [#allocation4], 1
    %575 = vsyncpa %s574, 1

// kernel: tpu_custom_call.1
$region0: #{tpu_custom_call.1}
  #allocation0 [shape = 'u32[]', space=smem, size = 0x4, offset = 0x4, fixed_abs, tag = 'smem constant byte address 0x4 - core index']
  #allocation1 [shape = 'u32[72,128]{1,0:T(1,128)}', space=vmem, size = 0x9000, scoped, tag = 'internal scratch']
  %s0 = inlined_call_operand.hbm [shape: f32[432,128], index: 0, kind: input, shape index: {}]
  %s1 = inlined_call_operand.hbm [shape: f32[1,128], index: 1, kind: input, shape index: {}]
  %s2 = inlined_call_operand.vmem [shape: f32[1,128], index: 2, kind: input, shape index: {}]
  %s3 = inlined_call_operand.hbm [shape: bf16[128,128], index: 3, kind: input, shape index: {}]
  %s4 = inlined_call_operand.vmem [shape: f32[1,128], index: 4, kind: input, shape index: {}]
  %s5 = inlined_call_operand.hbm [shape: f32[432,128], index: 5, kind: output, shape index: {}]
  %s6 = sld [smem:[#allocation0]]
  $region65: #{tpu_custom_call.1} parent=0
    _
  %s8 = ssub.s32 1, %s6
  %s9 = scalar_select 0, %s8, %s6
  $region1: #{tpu_custom_call.1} parent=0
    #allocation2 [shape = 'u8[49152]{0}', space=vmem, size = 0xc000, scoped, tag = 'input window, operand 0']
    #allocation3 [shape = 's32[2]{0}', space=sflag, size = 0x8, scoped, tag = 'scoped memory for tpu_custom_call.1']
    #allocation4 [shape = 's32[2]{0}', space=sflag, size = 0x8, scoped, tag = 'scoped memory for tpu_custom_call.1']
    #allocation5 [shape = 'u8[512]{0}', space=vmem, size = 0x400, scoped, tag = 'input window, operand 1, single buffered']
    #allocation6 [shape = 's32[1]{0}', space=sflag, size = 0x4, scoped, tag = 'scoped memory for tpu_custom_call.1']
    #allocation7 [shape = 'u8[32768]{0}', space=vmem, size = 0x8000, scoped, tag = 'input window, operand 3, single buffered']
    #allocation8 [shape = 'u8[49152]{0}', space=vmem, size = 0xc000, scoped, tag = 'output window, operand 0']
    %10 = vsyncpa [#allocation3], 0
    %s11 = scalar_lea.sflag [#allocation3], 1
    %12 = vsyncpa %s11, 0
    %13 = vsyncpa [#allocation6], 0
    %14 = vsyncpa [#allocation4], 0
    %s15 = scalar_lea.sflag [#allocation4], 1
    %16 = vsyncpa %s15, 0
    loop: start=0, step=1, limit=11
    $region2: #{tpu_custom_call.1} parent=1 // loop_pre_header
      _
    $region3: #{tpu_custom_call.1} parent=1 // loop_header
      %s18 = sphi 0, %s22
      %p19 = scmp.ge.s32.totalorder %s18, 11
      %s28 = sphi 0, %s30
      %s31 = sphi 0, %s28
      %s32 = sphi 0, %s31
      %s48 = sphi 0, %s32
      %s52 = sphi 0, %s52
      %s54 = sphi 0, %s52
      %s55 = sphi 0, %s54
      %s69 = sphi 0, %s55
      %s73 = sphi 0, %s73
      %s75 = sphi 0, %s73
      %s76 = sphi 0, %s75
      %s90 = sphi 0, %s76
      %s94 = sphi 0, %s94
      %s96 = sphi 0, %s94
      %s97 = sphi 0, %s96
      %s111 = sphi 0, %s97
      %s115 = sphi 0, %s115
      %s117 = sphi 0, %s115
      %s118 = sphi 0, %s117
      %s132 = sphi 0, %s118
      %s138 = sphi 0, %s140
      %s141 = sphi 0, %s138
      %s142 = sphi 0, %s141
      %s158 = sphi 0, %s142
    $region4: #{tpu_custom_call.1} parent=1 // loop_header_branch
      %21 = sbr.rel (%p19) target = $region8
    $region5: #{tpu_custom_call.1} parent=1 // loop_body
      %s23 = ssub.s32 %s18, 1
      %s24 = ssub.s32 %s18, 2
      %s25 = sadd.s32 %s18, 1
      %s26 = ssub.s32 %s18, %s25
      %p27 = scmp.eq.s32.totalorder %s26, 0
      %s29 = sadd.s32 %s28, 1
      %s30 = scalar_select %p27, %s28, %s29
      %p33 = pneg %p27
      %p34 = scmp.eq.s32.totalorder %s18, 8
      %p35 = por %p33, %p34
      %p36 = scmp.ne.s32.totalorder %s28, %s31
      %p37 = scmp.eq.s32.totalorder %s18, 0
      %p38 = por %p36, %p37
      %p39 = scmp.ne.s32.totalorder %s28, %s31
      %p40 = scmp.eq.s32.totalorder %s23, 8
      %p41 = por %p39, %p40
      %p42 = scmp.ne.s32.totalorder %s31, %s32
      %p43 = scmp.eq.s32.totalorder %s23, 0
      %p44 = por %p42, %p43
      %p45 = scmp.ne.s32.totalorder %s31, %s32
      %p46 = scmp.eq.s32.totalorder %s24, 8
      %p47 = por %p45, %p46
      %p49 = scmp.ne.s32.totalorder %s32, %s48
      %p50 = scmp.eq.s32.totalorder %s24, 0
      %p51 = por %p49, %p50
      %s53 = sadd.s32 %s52, 1
      %p56 = scmp.eq.s32.totalorder %s18, 8
      %p57 = scmp.ne.s32.totalorder %s52, %s54
      %p58 = scmp.eq.s32.totalorder %s18, 0
      %p59 = por %p57, %p58
      %p60 = scmp.ne.s32.totalorder %s52, %s54
      %p61 = scmp.eq.s32.totalorder %s23, 8
      %p62 = por %p60, %p61
      %p63 = scmp.ne.s32.totalorder %s54, %s55
      %p64 = scmp.eq.s32.totalorder %s23, 0
      %p65 = por %p63, %p64
      %p66 = scmp.ne.s32.totalorder %s54, %s55
      %p67 = scmp.eq.s32.totalorder %s24, 8
      %p68 = por %p66, %p67
      %p70 = scmp.ne.s32.totalorder %s55, %s69
      %p71 = scmp.eq.s32.totalorder %s24, 0
      %p72 = por %p70, %p71
      %s74 = sadd.s32 %s73, 1
      %p77 = scmp.eq.s32.totalorder %s18, 8
      %p78 = scmp.ne.s32.totalorder %s73, %s75
      %p79 = scmp.eq.s32.totalorder %s18, 0
      %p80 = por %p78, %p79
      %p81 = scmp.ne.s32.totalorder %s73, %s75
      %p82 = scmp.eq.s32.totalorder %s23, 8
      %p83 = por %p81, %p82
      %p84 = scmp.ne.s32.totalorder %s75, %s76
      %p85 = scmp.eq.s32.totalorder %s23, 0
      %p86 = por %p84, %p85
      %p87 = scmp.ne.s32.totalorder %s75, %s76
      %p88 = scmp.eq.s32.totalorder %s24, 8
      %p89 = por %p87, %p88
      %p91 = scmp.ne.s32.totalorder %s76, %s90
      %p92 = scmp.eq.s32.totalorder %s24, 0
      %p93 = por %p91, %p92
      %s95 = sadd.s32 %s94, 1
      %p98 = scmp.eq.s32.totalorder %s18, 8
      %p99 = scmp.ne.s32.totalorder %s94, %s96
      %p100 = scmp.eq.s32.totalorder %s18, 0
      %p101 = por %p99, %p100
      %p102 = scmp.ne.s32.totalorder %s94, %s96
      %p103 = scmp.eq.s32.totalorder %s23, 8
      %p104 = por %p102, %p103
      %p105 = scmp.ne.s32.totalorder %s96, %s97
      %p106 = scmp.eq.s32.totalorder %s23, 0
      %p107 = por %p105, %p106
      %p108 = scmp.ne.s32.totalorder %s96, %s97
      %p109 = scmp.eq.s32.totalorder %s24, 8
      %p110 = por %p108, %p109
      %p112 = scmp.ne.s32.totalorder %s97, %s111
      %p113 = scmp.eq.s32.totalorder %s24, 0
      %p114 = por %p112, %p113
      %s116 = sadd.s32 %s115, 1
      %p119 = scmp.eq.s32.totalorder %s18, 8
      %p120 = scmp.ne.s32.totalorder %s115, %s117
      %p121 = scmp.eq.s32.totalorder %s18, 0
      %p122 = por %p120, %p121
      %p123 = scmp.ne.s32.totalorder %s115, %s117
      %p124 = scmp.eq.s32.totalorder %s23, 8
      %p125 = por %p123, %p124
      %p126 = scmp.ne.s32.totalorder %s117, %s118
      %p127 = scmp.eq.s32.totalorder %s23, 0
      %p128 = por %p126, %p127
      %p129 = scmp.ne.s32.totalorder %s117, %s118
      %p130 = scmp.eq.s32.totalorder %s24, 8
      %p131 = por %p129, %p130
      %p133 = scmp.ne.s32.totalorder %s118, %s132
      %p134 = scmp.eq.s32.totalorder %s24, 0
      %p135 = por %p133, %p134
      %s136 = ssub.s32 %s18, %s25
      %p137 = scmp.eq.s32.totalorder %s136, 0
      %s139 = sadd.s32 %s138, 1
      %s140 = scalar_select %p137, %s138, %s139
      %p143 = pneg %p137
      %p144 = scmp.eq.s32.totalorder %s18, 8
      %p145 = por %p143, %p144
      %p146 = scmp.ne.s32.totalorder %s138, %s141
      %p147 = scmp.eq.s32.totalorder %s18, 0
      %p148 = por %p146, %p147
      %p149 = scmp.ne.s32.totalorder %s138, %s141
      %p150 = scmp.eq.s32.totalorder %s23, 8
      %p151 = por %p149, %p150
      %p152 = scmp.ne.s32.totalorder %s141, %s142
      %p153 = scmp.eq.s32.totalorder %s23, 0
      %p154 = por %p152, %p153
      %p155 = scmp.ne.s32.totalorder %s141, %s142
      %p156 = scmp.eq.s32.totalorder %s24, 8
      %p157 = por %p155, %p156
      %p159 = scmp.ne.s32.totalorder %s142, %s158
      %p160 = scmp.eq.s32.totalorder %s24, 0
      %p161 = por %p159, %p160
      %p162 = scmp.le.s32.totalorder 1, %s18
      %p163 = scmp.lt.s32.totalorder %s18, 10
      %p164 = pnand %p162, %p163
      %p165 = pneg %p164
      // Predicated region
      $region9: #{tpu_custom_call.1} parent=5 // pred_check
        _
      $region10: #{tpu_custom_call.1} parent=5 // pred_check_branch
        %167 = sbr.rel (%p164) target = $region12
      $region11: #{tpu_custom_call.1} parent=5 // pred_region
        %s168 = ssub.s32 %s18, 1
        // Predicated region
        $region13: #{tpu_custom_call.1} parent=11 // pred_check
          %p169 = pneg %p65
        $region14: #{tpu_custom_call.1} parent=11 // pred_check_branch
          %171 = sbr.rel (%p169) target = $region16
        $region15: #{tpu_custom_call.1} parent=11 // pred_region
          %173 = vsyncadd [#allocation6], 0
          %s175 = sshll.u32 %s1, 4
          %s176 = int_to_ptr.hbm [resolvable:$true] %s175
          %s177 = sshll.u32 [#allocation5], 4
          %s178 = int_to_ptr.vmem [resolvable:$true] %s177
          %180 = dma.hbm_to_vmem [thread:$0]  %s176, 16, %s178, [#allocation6]
        $region16: #{tpu_custom_call.1} parent=11 // pred_fallthru
          _
        // Predicated region
        $region17: #{tpu_custom_call.1} parent=11 // pred_check
          %p181 = pneg %p86
        $region18: #{tpu_custom_call.1} parent=11 // pred_check_branch
          %183 = sbr.rel (%p181) target = $region20
        $region19: #{tpu_custom_call.1} parent=11 // pred_region
          _
        $region20: #{tpu_custom_call.1} parent=11 // pred_fallthru
          _
        // Predicated region
        $region21: #{tpu_custom_call.1} parent=11 // pred_check
          %p184 = pneg %p107
        $region22: #{tpu_custom_call.1} parent=11 // pred_check_branch
          %186 = sbr.rel (%p184) target = $region24
        $region23: #{tpu_custom_call.1} parent=11 // pred_region
          %188 = vsyncadd [#allocation6], 0
          %s189 = sshll.u32 %s3, 4
          %s190 = int_to_ptr.hbm [resolvable:$true] %s189
          %s191 = sshll.u32 [#allocation7], 4
          %s192 = int_to_ptr.vmem [resolvable:$true] %s191
          %197 = dma.hbm_to_vmem [thread:$0]  %s190, 1024, %s192, [#allocation6], 64, 64, 4
        $region24: #{tpu_custom_call.1} parent=11 // pred_fallthru
          _
        // Predicated region
        $region25: #{tpu_custom_call.1} parent=11 // pred_check
          %p198 = pneg %p128
        $region26: #{tpu_custom_call.1} parent=11 // pred_check_branch
          %200 = sbr.rel (%p198) target = $region28
        $region27: #{tpu_custom_call.1} parent=11 // pred_region
          _
        $region28: #{tpu_custom_call.1} parent=11 // pred_fallthru
          _
      $region12: #{tpu_custom_call.1} parent=5 // pred_fallthru
        _
      %p201 = scmp.lt.s32.totalorder %s18, 9
      // Predicated region
      $region29: #{tpu_custom_call.1} parent=5 // pred_check
        %p202 = pneg %p201
      $region30: #{tpu_custom_call.1} parent=5 // pred_check_branch
        %204 = sbr.rel (%p202) target = $region32
      $region31: #{tpu_custom_call.1} parent=5 // pred_region
        // Predicated region
        $region33: #{tpu_custom_call.1} parent=31 // pred_check
          %p205 = pneg %p38
        $region34: #{tpu_custom_call.1} parent=31 // pred_check_branch
          %207 = sbr.rel (%p205) target = $region36
        $region35: #{tpu_custom_call.1} parent=31 // pred_region
          %s208 = sand.u32 %s28, 1
          %s209 = scalar_lea.sflag [#allocation3], %s208
          %s210 = sand.u32 %s28, 1
          %s211 = smul.addr %s210, 48
          %s212 = scalar_lea.vmem [#allocation2], %s211
          %s213 = smul.u32 6, %s18
          %215 = vsyncadd %s209, 0
          %s216 = smul.addr %s213, 8
          %s217 = scalar_lea.hbm %s0, %s216
          %s218 = sshll.u32 %s217, 4
          %s219 = int_to_ptr.hbm [resolvable:$true] %s218
          %s220 = sshll.u32 %s212, 4
          %s221 = int_to_ptr.vmem [resolvable:$true] %s220
          %226 = dma.hbm_to_vmem [thread:$0]  %s219, 768, %s221, %s209, 128, 128, 8
        $region36: #{tpu_custom_call.1} parent=31 // pred_fallthru
          _
      $region32: #{tpu_custom_call.1} parent=5 // pred_fallthru
        _
      %p227 = scmp.le.s32.totalorder 1, %s18
      %p228 = scmp.lt.s32.totalorder %s18, 10
      %p229 = pnand %p227, %p228
      %p230 = pneg %p229
      // Predicated region
      $region37: #{tpu_custom_call.1} parent=5 // pred_check
        _
      $region38: #{tpu_custom_call.1} parent=5 // pred_check_branch
        %232 = sbr.rel (%p229) target = $region40
      $region39: #{tpu_custom_call.1} parent=5 // pred_region
        %s233 = ssub.s32 %s18, 1
        %s234 = sand.u32 %s31, 1
        %s235 = scalar_lea.sflag [#allocation3], %s234
        %s236 = sand.u32 %s31, 1
        %s237 = smul.addr %s236, 48
        %s238 = scalar_lea.vmem [#allocation2], %s237
        // Predicated region
        $region41: #{tpu_custom_call.1} parent=39 // pred_check
          %p239 = pneg %p44
        $region42: #{tpu_custom_call.1} parent=39 // pred_check_branch
          %241 = sbr.rel (%p239) target = $region44
        $region43: #{tpu_custom_call.1} parent=39 // pred_region
          %243 = dma.done %s235, 768
        $region44: #{tpu_custom_call.1} parent=39 // pred_fallthru
          _
        // Predicated region
        $region45: #{tpu_custom_call.1} parent=39 // pred_check
          %p244 = pneg %p65
        $region46: #{tpu_custom_call.1} parent=39 // pred_check_branch
          %246 = sbr.rel (%p244) target = $region48
        $region47: #{tpu_custom_call.1} parent=39 // pred_region
          %248 = dma.done [#allocation6], 16
        $region48: #{tpu_custom_call.1} parent=39 // pred_fallthru
          _
        // Predicated region
        $region49: #{tpu_custom_call.1} parent=39 // pred_check
          %p249 = pneg %p107
        $region50: #{tpu_custom_call.1} parent=39 // pred_check_branch
          %251 = sbr.rel (%p249) target = $region52
        $region51: #{tpu_custom_call.1} parent=39 // pred_region
          %253 = dma.done [#allocation6], 1024
        $region52: #{tpu_custom_call.1} parent=39 // pred_fallthru
          _
        %s254 = sand.u32 %s31, 1
        %s255 = scalar_lea.sflag [#allocation3], %s254
        %s256 = sand.u32 %s31, 1
        %s257 = smul.addr %s256, 48
        %s258 = scalar_lea.vmem [#allocation2], %s257
        %p259 = pneg %p44
        %p260 = pneg %p41
        %p261 = pneg %p65
        %p262 = pneg %p62
        %p263 = pneg %p86
        %p264 = pneg %p83
        %p265 = pneg %p107
        %p266 = pneg %p104
        %p267 = pneg %p128
        %p268 = pneg %p125
        %p269 = pneg %p154
        %p270 = pneg %p151
        %s271 = sand.u32 %s141, 1
        %s272 = scalar_lea.sflag [#allocation4], %s271
        %s273 = sand.u32 %s141, 1
        %s274 = smul.addr %s273, 48
        %s275 = scalar_lea.vmem [#allocation8], %s274
        %s276 = smul.u32 6, %s23
        %s277 = smul.u32 6, %s23
        %v278 = vld [vmem:[%s238] sm:$0xff]
        %v279 = vld [vmem:[%s238 + $0x8] sm:$0xff]
        %v280 = vld [vmem:[%s238 + $0x10] sm:$0xff]
        %v281 = vld [vmem:[%s238 + $0x18] sm:$0xff]
        %v282 = vld [vmem:[%s238 + $0x20] sm:$0xff]
        %v283 = vld [vmem:[%s238 + $0x28] sm:$0xff]
        %284 = vadd.xlane.f32.xlu0 %v278
        %v285 = vpop.xlane.xlu0 %284
        %286 = vadd.xlane.f32.xlu0 %v279
        %v287 = vpop.xlane.xlu0 %286
        %288 = vadd.xlane.f32.xlu0 %v280
        %v289 = vpop.xlane.xlu0 %288
        %290 = vadd.xlane.f32.xlu0 %v281
        %v291 = vpop.xlane.xlu0 %290
        %292 = vadd.xlane.f32.xlu0 %v282
        %v293 = vpop.xlane.xlu0 %292
        %294 = vadd.xlane.f32.xlu0 %v283
        %v295 = vpop.xlane.xlu0 %294
        %v296 = vrcp.pop 128.0
        %v297 = vmul.f32 128.0, %v296
        %v298 = vsub.f32 1.0, %v297
        %v299 = vmul.f32 %v296, %v298
        %v300 = vadd.f32 %v296, %v299
        %vm301 = vweird.f32 %v296
        %v302 = vsel %vm301, %v296, %v300
        %v303 = vmul.f32 %v285, %v302
        %v304 = vmul.f32 %v287, %v302
        %v305 = vmul.f32 %v289, %v302
        %v306 = vmul.f32 %v291, %v302
        %v307 = vmul.f32 %v293, %v302
        %v308 = vmul.f32 %v295, %v302
        %v309 = vsub.f32 %v278, %v303
        %v310 = vsub.f32 %v279, %v304
        %v311 = vsub.f32 %v280, %v305
        %v312 = vsub.f32 %v281, %v306
        %v313 = vsub.f32 %v282, %v307
        %v314 = vsub.f32 %v283, %v308
        %v315 = vmul.f32 %v309, %v309
        %v316 = vmul.f32 %v310, %v310
        %v317 = vmul.f32 %v311, %v311
        %v318 = vmul.f32 %v312, %v312
        %v319 = vmul.f32 %v313, %v313
        %v320 = vmul.f32 %v314, %v314
        %321 = vadd.xlane.f32.xlu0 %v315
        %v322 = vpop.xlane.xlu0 %321
        %323 = vadd.xlane.f32.xlu0 %v316
        %v324 = vpop.xlane.xlu0 %323
        %325 = vadd.xlane.f32.xlu0 %v317
        %v326 = vpop.xlane.xlu0 %325
        %327 = vadd.xlane.f32.xlu0 %v318
        %v328 = vpop.xlane.xlu0 %327
        %329 = vadd.xlane.f32.xlu0 %v319
        %v330 = vpop.xlane.xlu0 %329
        %331 = vadd.xlane.f32.xlu0 %v320
        %v332 = vpop.xlane.xlu0 %331
        %v333 = vmul.f32 %v322, %v302
        %v334 = vmul.f32 %v324, %v302
        %v335 = vmul.f32 %v326, %v302
        %v336 = vmul.f32 %v328, %v302
        %v337 = vmul.f32 %v330, %v302
        %v338 = vmul.f32 %v332, %v302
        %v339 = vadd.f32 %v333, 1e-05
        %v340 = vadd.f32 %v334, 1e-05
        %v341 = vadd.f32 %v335, 1e-05
        %v342 = vadd.f32 %v336, 1e-05
        %v343 = vadd.f32 %v337, 1e-05
        %v344 = vadd.f32 %v338, 1e-05
        %v345 = vrsqrt.pop %v339
        %v346 = vmul.f32 %v345, %v339
        %v347 = vmul.f32 %v346, %v345
        %v348 = vmul.f32 0.5, %v347
        %v349 = vsub.f32 1.5, %v348
        %v350 = vmul.f32 %v345, %v349
        %vm351 = vweird.f32 %v339
        %vm352 = vweird.f32 %v345
        %vm353 = vmor %vm351, %vm352
        %v354 = vsel %vm353, %v345, %v350
        %v355 = vrsqrt.pop %v340
        %v356 = vmul.f32 %v355, %v340
        %v357 = vmul.f32 %v356, %v355
        %v358 = vmul.f32 0.5, %v357
        %v359 = vsub.f32 1.5, %v358
        %v360 = vmul.f32 %v355, %v359
        %vm361 = vweird.f32 %v340
        %vm362 = vweird.f32 %v355
        %vm363 = vmor %vm361, %vm362
        %v364 = vsel %vm363, %v355, %v360
        %v365 = vrsqrt.pop %v341
        %v366 = vmul.f32 %v365, %v341
        %v367 = vmul.f32 %v366, %v365
        %v368 = vmul.f32 0.5, %v367
        %v369 = vsub.f32 1.5, %v368
        %v370 = vmul.f32 %v365, %v369
        %vm371 = vweird.f32 %v341
        %vm372 = vweird.f32 %v365
        %vm373 = vmor %vm371, %vm372
        %v374 = vsel %vm373, %v365, %v370
        %v375 = vrsqrt.pop %v342
        %v376 = vmul.f32 %v375, %v342
        %v377 = vmul.f32 %v376, %v375
        %v378 = vmul.f32 0.5, %v377
        %v379 = vsub.f32 1.5, %v378
        %v380 = vmul.f32 %v375, %v379
        %vm381 = vweird.f32 %v342
        %vm382 = vweird.f32 %v375
        %vm383 = vmor %vm381, %vm382
        %v384 = vsel %vm383, %v375, %v380
        %v385 = vrsqrt.pop %v343
        %v386 = vmul.f32 %v385, %v343
        %v387 = vmul.f32 %v386, %v385
        %v388 = vmul.f32 0.5, %v387
        %v389 = vsub.f32 1.5, %v388
        %v390 = vmul.f32 %v385, %v389
        %vm391 = vweird.f32 %v343
        %vm392 = vweird.f32 %v385
        %vm393 = vmor %vm391, %vm392
        %v394 = vsel %vm393, %v385, %v390
        %v395 = vrsqrt.pop %v344
        %v396 = vmul.f32 %v395, %v344
        %v397 = vmul.f32 %v396, %v395
        %v398 = vmul.f32 0.5, %v397
        %v399 = vsub.f32 1.5, %v398
        %v400 = vmul.f32 %v395, %v399
        %vm401 = vweird.f32 %v344
        %vm402 = vweird.f32 %v395
        %vm403 = vmor %vm401, %vm402
        %v404 = vsel %vm403, %v395, %v400
        %v405 = vmul.f32 %v309, %v354
        %v406 = vmul.f32 %v310, %v364
        %v407 = vmul.f32 %v311, %v374
        %v408 = vmul.f32 %v312, %v384
        %v409 = vmul.f32 %v313, %v394
        %v410 = vmul.f32 %v314, %v404
        %v411 = vld [vmem:[#allocation5] sm:$0x1]
        %v413 = vperm.slane %v411, 0
        %v415 = vmul.f32 %v405, %v413
        %v416 = vmul.f32 %v406, %v413
        %v417 = vmul.f32 %v407, %v413
        %v418 = vmul.f32 %v408, %v413
        %v419 = vmul.f32 %v409, %v413
        %v420 = vmul.f32 %v410, %v413
        %v421 = vld [vmem:[%s2] sm:$0x1]
        %v423 = vperm.slane %v421, 0
        %v425 = vadd.f32 %v415, %v423
        %v426 = vadd.f32 %v416, %v423
        %v427 = vadd.f32 %v417, %v423
        %v428 = vadd.f32 %v418, %v423
        %v429 = vadd.f32 %v419, %v423
        %v430 = vadd.f32 %v420, %v423
        %v431 = vpack.c.bf16 %v426, %v425
        %v432 = vpack.c.bf16 %v428, %v427
        %v433 = vpack.c.bf16 %v430, %v429
        %v434 = vld [vmem:[#allocation7] sm:$0xf]
        %v435 = vld [vmem:[#allocation7 + $0x4] sm:$0xf]
        %v436 = vld [vmem:[#allocation7 + $0x8] sm:$0xf]
        %v437 = vld [vmem:[#allocation7 + $0xc] sm:$0xf]
        %v438 = vld [vmem:[#allocation7 + $0x10] sm:$0xf]
        %v439 = vld [vmem:[#allocation7 + $0x14] sm:$0xf]
        %v440 = vld [vmem:[#allocation7 + $0x18] sm:$0xf]
        %v441 = vld [vmem:[#allocation7 + $0x1c] sm:$0xf]
        %v442 = vld [vmem:[#allocation7 + $0x20] sm:$0xf]
        %v443 = vld [vmem:[#allocation7 + $0x24] sm:$0xf]
        %v444 = vld [vmem:[#allocation7 + $0x28] sm:$0xf]
        %v445 = vld [vmem:[#allocation7 + $0x2c] sm:$0xf]
        %v446 = vld [vmem:[#allocation7 + $0x30] sm:$0xf]
        %v447 = vld [vmem:[#allocation7 + $0x34] sm:$0xf]
        %v448 = vld [vmem:[#allocation7 + $0x38] sm:$0xf]
        %v449 = vld [vmem:[#allocation7 + $0x3c] sm:$0xf]
        %v450 = vld [vmem:[%s4] sm:$0x1]
        %v452 = vperm.slane %v450, 0
        %v470 = vunpack.c.l.b16 %v434
        %v471 = vunpack.c.l.b16 %v435
        %v472 = vunpack.c.l.b16 %v436
        %v473 = vunpack.c.l.b16 %v437
        %v474 = vunpack.c.l.b16 %v438
        %v475 = vunpack.c.l.b16 %v439
        %v476 = vunpack.c.l.b16 %v440
        %v477 = vunpack.c.l.b16 %v441
        %v478 = vunpack.c.l.b16 %v442
        %v479 = vunpack.c.l.b16 %v443
        %v480 = vunpack.c.l.b16 %v444
        %v481 = vunpack.c.l.b16 %v445
        %v482 = vunpack.c.l.b16 %v446
        %v483 = vunpack.c.l.b16 %v447
        %v484 = vunpack.c.l.b16 %v448
        %v485 = vunpack.c.l.b16 %v449
        %v486 = vpack.c.b16 %v471, %v470
        %v487 = vpack.c.b16 %v473, %v472
        %v488 = vpack.c.b16 %v475, %v474
        %v489 = vpack.c.b16 %v477, %v476
        %v490 = vpack.c.b16 %v479, %v478
        %v491 = vpack.c.b16 %v481, %v480
        %v492 = vpack.c.b16 %v483, %v482
        %v493 = vpack.c.b16 %v485, %v484
        %502 = vmatpush.bf16.msra.mxu0 %v493
        %503 = vmatpush.bf16.msra.mxu0 %v492
        %504 = vmatpush.bf16.msra.mxu0 %v491
        %505 = vmatpush.bf16.msra.mxu0 %v490
        %506 = vmatpush.bf16.msra.mxu0 %v489
        %507 = vmatpush.bf16.msra.mxu0 %v488
        %508 = vmatpush.bf16.msra.mxu0 %v487
        %509 = vmatpush.bf16.msra.mxu0 %v486
        %510 = vmatmul.bf16.gmra.mxu0 %v431
        %v511 = vpop.f32.mrf.mxu0
        %v512 = vadd.f32 %v452, %v511
        %v513 = vpop.f32.mrf.mxu0
        %v514 = vadd.f32 %v452, %v513
        %515 = vmatmul.bf16.gmra.mxu0 %v432
        %v516 = vpop.f32.mrf.mxu0
        %v517 = vadd.f32 %v452, %v516
        %v518 = vpop.f32.mrf.mxu0
        %v519 = vadd.f32 %v452, %v518
        %520 = vmatmul.bf16.gmra.mxu0 %v433
        %v521 = vpop.f32.mrf.mxu0
        %v522 = vadd.f32 %v452, %v521
        %v523 = vpop.f32.mrf.mxu0
        %v524 = vadd.f32 %v452, %v523
        %525 = vdwg.mxu0
        %526 = vst [vmem:[%s275] sm:$0xff] %v512
        %527 = vst [vmem:[%s275 + $0x8] sm:$0xff] %v514
        %528 = vst [vmem:[%s275 + $0x10] sm:$0xff] %v517
        %529 = vst [vmem:[%s275 + $0x18] sm:$0xff] %v519
        %530 = vst [vmem:[%s275 + $0x20] sm:$0xff] %v522
        %531 = vst [vmem:[%s275 + $0x28] sm:$0xff] %v524
        %s532 = sand.u32 %s141, 1
        %s533 = scalar_lea.sflag [#allocation4], %s532
        %s534 = sand.u32 %s141, 1
        %s535 = smul.addr %s534, 48
        %s536 = scalar_lea.vmem [#allocation8], %s535
        // Predicated region
        $region53: #{tpu_custom_call.1} parent=39 // pred_check
          %p537 = pneg %p151
        $region54: #{tpu_custom_call.1} parent=39 // pred_check_branch
          %539 = sbr.rel (%p537) target = $region56
        $region55: #{tpu_custom_call.1} parent=39 // pred_region
          %s540 = smul.u32 6, %s23
          %542 = vsyncadd %s533, 0
          %s543 = smul.addr %s540, 8
          %s544 = scalar_lea.hbm %s5, %s543
          %s545 = sshll.u32 %s536, 4
          %s546 = int_to_ptr.vmem [resolvable:$true] %s545
          %s547 = sshll.u32 %s544, 4
          %s548 = int_to_ptr.hbm [resolvable:$true] %s547
          %553 = dma.vmem_to_hbm [thread:$0]  %s546, 768, %s548, %s533, 128, 128, 8
        $region56: #{tpu_custom_call.1} parent=39 // pred_fallthru
          _
      $region40: #{tpu_custom_call.1} parent=5 // pred_fallthru
        _
      %p554 = scmp.le.s32.totalorder 2, %s18
      // Predicated region
      $region57: #{tpu_custom_call.1} parent=5 // pred_check
        %p555 = pneg %p554
      $region58: #{tpu_custom_call.1} parent=5 // pred_check_branch
        %557 = sbr.rel (%p555) target = $region60
      $region59: #{tpu_custom_call.1} parent=5 // pred_region
        %s558 = ssub.s32 %s18, 2
        // Predicated region
        $region61: #{tpu_custom_call.1} parent=59 // pred_check
          %p559 = pneg %p157
        $region62: #{tpu_custom_call.1} parent=59 // pred_check_branch
          %561 = sbr.rel (%p559) target = $region64
        $region63: #{tpu_custom_call.1} parent=59 // pred_region
          %s562 = sand.u32 %s142, 1
          %s563 = scalar_lea.sflag [#allocation4], %s562
          %s564 = sand.u32 %s142, 1
          %s565 = smul.addr %s564, 48
          %s566 = scalar_lea.vmem [#allocation8], %s565
          %568 = dma.done %s563, 768
        $region64: #{tpu_custom_call.1} parent=59 // pred_fallthru
          _
      $region60: #{tpu_custom_call.1} parent=5 // pred_fallthru
        _
    $region6: #{tpu_custom_call.1} parent=1 // loop_footer
      %s22 = sadd.s32 1, %s18
    $region7: #{tpu_custom_call.1} parent=1 // loop_footer_branch
      %17 = sbr.rel target = $region3
    $region8: #{tpu_custom_call.1} parent=1 // loop_exit
      _
    %569 = vsyncpa [#allocation3], 1
    %s570 = scalar_lea.sflag [#allocation3], 1
    %571 = vsyncpa %s570, 1
    %572 = vsyncpa [#allocation6], 1
    %573 = vsyncpa [#allocation4], 1
    %s574 = scalar_lea.sflag [#allocation4], 1
    %575 = vsyncpa %s574, 1

</llo_original>
